<compile_context>
chip_gen: v7x
topology: tpu7x:2x2x1
jax: 0.10.0
libtpu: 0.0.40
codegen_flags: <defaults>
</compile_context>

<pallas_src>
import functools

import jax
import jax.numpy as jnp
from jax.experimental import pallas as pl
from jax.experimental.pallas import tpu as pltpu

_LANE = 128
_SUBLANE = 16   # bf16 sublane packing granularity (also a multiple of f32's 8)


def _round_up(x, m):
    return ((x + m - 1) // m) * m


def _fused_mlp_kernel(*refs, num_layers):
    # refs = (x_ref, w0, b0, w1, b1, ..., o_ref)
    x_ref = refs[0]
    o_ref = refs[-1]
    wb = refs[1:-1]

    h = x_ref[...]                                    # bf16 activations
    for i in range(num_layers):
        w_ref = wb[2 * i]
        b_ref = wb[2 * i + 1]
        acc = jnp.dot(h, w_ref[...], preferred_element_type=jnp.float32)  # MXU, f32 acc
        acc = acc + b_ref[...]                        # f32 bias add (f32 VPU on v5e too)
        if i < num_layers - 1:
            acc = jnp.maximum(acc, 0.0)               # ReLU in f32
            h = acc.astype(jnp.bfloat16)              # back to bf16 for next MXU op
        else:
            h = acc
    o_ref[...] = h.astype(o_ref.dtype)


def mlp_forward(x, params, *, tile_m=1024):
    """Fused MLP forward. x: (..., input_dim) -> (..., output_dim)."""
    num_layers = len(params)
    lead_shape = x.shape[:-1]
    out_dim = params[-1][0].shape[1]

    x2d = x.reshape(-1, x.shape[-1])
    M, D_in = x2d.shape

    # --- lane-align every feature dim to a multiple of 128 (zero padding) ---
    d_pad = [_round_up(D_in, _LANE)]
    kernel_params = []
    for (w, b) in params:
        k_pad = _round_up(w.shape[0], _LANE)
        n_pad = _round_up(w.shape[1], _LANE)
        assert k_pad == d_pad[-1], "layer dims must chain"
        w_p = jnp.pad(w, ((0, k_pad - w.shape[0]), (0, n_pad - w.shape[1])))
        b_p = jnp.pad(b, ((0, 0), (0, n_pad - b.shape[1])))
        kernel_params.append((w_p.astype(jnp.bfloat16),       # bf16 MXU operand
                              b_p.astype(jnp.float32)))        # f32 bias
        d_pad.append(n_pad)
    D_in_pad, N_out_pad = d_pad[0], d_pad[-1]
    if D_in_pad != D_in:
        x2d = jnp.pad(x2d, ((0, 0), (0, D_in_pad - D_in)))

    # --- row tiling: >= 2 tiles so v7x megacore can split the grid ----------
    Mg = _round_up(max(M, 1), _SUBLANE)
    if Mg <= _SUBLANE:
        TM = Mg
    else:
        n_tiles = max(2, pl.cdiv(Mg, tile_m))
        TM = _round_up(pl.cdiv(Mg, n_tiles), _SUBLANE)
    M_pad = _round_up(M, TM)
    if M_pad != M:
        x2d = jnp.pad(x2d, ((0, M_pad - M), (0, 0)))
    x2d = x2d.astype(jnp.bfloat16)                     # halve input DMA bytes
    grid = (M_pad // TM,)

    # --- specs ---------------------------------------------------------------
    in_specs = [pl.BlockSpec((TM, D_in_pad), lambda i: (i, 0))]
    flat_params = []
    for (w, b) in kernel_params:
        in_specs.append(pl.BlockSpec(w.shape, lambda i: (0, 0)))   # VMEM-resident
        in_specs.append(pl.BlockSpec(b.shape, lambda i: (0, 0)))   # VMEM-resident
        flat_params.extend([w, b])
    out_spec = pl.BlockSpec((TM, N_out_pad), lambda i: (i, 0))

    # --- cost estimate from the TRUE (unpadded) problem ----------------------
    flops = 0
    weight_bytes = 0
    for (w, b) in params:
        k, n = w.shape
        flops += 2 * M * k * n
        weight_bytes += w.size * 2 + b.size * 4        # bf16 weights, f32 bias
    bytes_accessed = M * D_in * 2 + M * out_dim * 2 + weight_bytes
    cost = pl.CostEstimate(flops=flops, transcendentals=0,
                           bytes_accessed=bytes_accessed)

    # --- explicit VMEM budget (double-buffered tiles + resident weights) -----
    vmem_need = 2 * TM * D_in_pad * 2                  # x tile, bf16, 2 buffers
    vmem_need += 2 * TM * N_out_pad * 2                # out tile, bf16, 2 buffers
    for (w, b) in kernel_params:
        vmem_need += 2 * (w.size * 2 + b.size * 4)
    vmem_limit = min(max(2 * vmem_need, 32 << 20), 64 << 20)

    kernel = functools.partial(_fused_mlp_kernel, num_layers=num_layers)
    out_padded = pl.pallas_call(
        kernel,
        out_shape=jax.ShapeDtypeStruct((M_pad, N_out_pad), jnp.bfloat16),
        grid=grid,
        in_specs=in_specs,
        out_specs=out_spec,
        compiler_params=pltpu.CompilerParams(
            dimension_semantics=("parallel",),
            vmem_limit_bytes=vmem_limit,
        ),
        cost_estimate=cost,
    )(x2d, *flat_params)

    out = out_padded[:M, :out_dim].astype(x.dtype)
    return out.reshape(*lead_shape, out_dim)


def init_mlp_params(key, input_dim, hidden_dim, output_dim, num_layers,
                    dtype=jnp.float32):
    """Deterministic init matching nn.Linear shapes (weights pre-transposed)."""
    dims_in = [input_dim] + [hidden_dim] * (num_layers - 1)
    dims_out = [hidden_dim] * (num_layers - 1) + [output_dim]
    params = []
    for n_in, n_out in zip(dims_in, dims_out):
        key, kw, kb = jax.random.split(key, 3)
        bound = 1.0 / jnp.sqrt(n_in)  # PyTorch nn.Linear default uniform bound
        w = jax.random.uniform(kw, (n_in, n_out), dtype, -bound, bound)
        b = jax.random.uniform(kb, (1, n_out), dtype, -bound, bound)
        params.append((w, b))
    return params


def mlp_reference(x, params, compute_dtype=jnp.float32):
    """Pure-JAX reference, optionally mimicking the kernel's bf16 matmuls."""
    num_layers = len(params)
    h = x.astype(compute_dtype)
    for i, (w, b) in enumerate(params):
        y = jnp.dot(h, w.astype(compute_dtype),
                    preferred_element_type=jnp.float32)
        y = y + b[0].astype(jnp.float32)
        if i < num_layers - 1:
            y = jax.nn.relu(y)
            h = y.astype(compute_dtype)
        else:
            h = y
    return h.astype(x.dtype)


if __name__ == "__main__":
    # Real DETR bbox-head config: 3-layer MLP, hidden = d_model = 256, 4 outputs.
    # (256 is naturally 128-lane aligned -> no feature padding is added.)
    batch, num_queries = 2, 32           # small batch x query count
    input_dim, hidden_dim, output_dim, num_layers = 256, 256, 4, 3

    key = jax.random.PRNGKey(0)
    kx, kp = jax.random.split(key)
    x = jax.random.normal(kx, (batch, num_queries, input_dim), jnp.float32)
    params = init_mlp_params(kp, input_dim, hidden_dim, output_dim, num_layers)

    out = mlp_forward(x, params)
    out = jax.block_until_ready(out)

    # Reference with matching bf16-operand / f32-accumulate numerics.
    ref = mlp_reference(x, params, compute_dtype=jnp.bfloat16)
    assert out.shape == (batch, num_queries, output_dim), out.shape
    max_err = float(jnp.max(jnp.abs(out - ref)))
    assert jnp.allclose(out, ref, atol=2e-2, rtol=2e-2), max_err

    print("KERNEL_OK")
</pallas_src>

<mosaic_0001>
module attributes {stable_mosaic.version = 11 : i64} {
  func.func @_fused_mlp_kernel(%arg0: i32, %arg1: memref<32x256xbf16, #tpu.memory_space<vmem>>, %arg2: memref<256x256xbf16, #tpu.memory_space<vmem>>, %arg3: memref<1x256xf32, #tpu.memory_space<vmem>>, %arg4: memref<256x256xbf16, #tpu.memory_space<vmem>>, %arg5: memref<1x256xf32, #tpu.memory_space<vmem>>, %arg6: memref<256x128xbf16, #tpu.memory_space<vmem>>, %arg7: memref<1x128xf32, #tpu.memory_space<vmem>>, %arg8: memref<32x128xbf16, #tpu.memory_space<vmem>>) attributes {dimension_semantics = [#tpu.dimension_semantics<parallel>], iteration_bounds = array<i64: 2>, scalar_prefetch = 0 : i64, scratch_operands = 0 : i64, tpu.core_type = #tpu.core_type<tc>, window_params = [{transform_indices = @transform_0, window_bounds = array<i64: 32, 256>}, {pipeline_mode = #tpu.pipeline_mode<synchronous>, transform_indices = @transform_1, window_bounds = array<i64: 256, 256>}, {pipeline_mode = #tpu.pipeline_mode<synchronous>, transform_indices = @transform_2, window_bounds = array<i64: 1, 256>}, {pipeline_mode = #tpu.pipeline_mode<synchronous>, transform_indices = @transform_3, window_bounds = array<i64: 256, 256>}, {pipeline_mode = #tpu.pipeline_mode<synchronous>, transform_indices = @transform_4, window_bounds = array<i64: 1, 256>}, {pipeline_mode = #tpu.pipeline_mode<synchronous>, transform_indices = @transform_5, window_bounds = array<i64: 256, 128>}, {pipeline_mode = #tpu.pipeline_mode<synchronous>, transform_indices = @transform_6, window_bounds = array<i64: 1, 128>}, {transform_indices = @transform_7, window_bounds = array<i64: 32, 128>}]} {
    %c0 = arith.constant 0 : index
    %c0_0 = arith.constant 0 : index
    %0 = vector.load %arg1[%c0, %c0_0] : memref<32x256xbf16, #tpu.memory_space<vmem>>, vector<32x256xbf16>
    %c0_1 = arith.constant 0 : index
    %c0_2 = arith.constant 0 : index
    %1 = vector.load %arg2[%c0_1, %c0_2] : memref<256x256xbf16, #tpu.memory_space<vmem>>, vector<256x256xbf16>
    %cst = arith.constant dense<0.000000e+00> : vector<32x256xf32>
    %2 = tpu.matmul %0, %1, %cst {dimension_numbers = #tpu.dot_dimension_numbers<[1], [0], [0], [1], [0, 0, 1, 1], [], []>} : vector<32x256xbf16>, vector<256x256xbf16>, vector<32x256xf32> -> vector<32x256xf32>
    %c0_3 = arith.constant 0 : index
    %c0_4 = arith.constant 0 : index
    %3 = vector.load %arg3[%c0_3, %c0_4] : memref<1x256xf32, #tpu.memory_space<vmem>>, vector<1x256xf32>
    %4 = vector.broadcast %3 : vector<1x256xf32> to vector<32x256xf32>
    %5 = arith.addf %2, %4 : vector<32x256xf32>
    %cst_5 = arith.constant 0.000000e+00 : f32
    %6 = vector.broadcast %cst_5 : f32 to vector<32x256xf32>
    %7 = arith.maximumf %5, %6 : vector<32x256xf32>
    %8 = arith.truncf %7 : vector<32x256xf32> to vector<32x256xbf16>
    %c0_6 = arith.constant 0 : index
    %c0_7 = arith.constant 0 : index
    %9 = vector.load %arg4[%c0_6, %c0_7] : memref<256x256xbf16, #tpu.memory_space<vmem>>, vector<256x256xbf16>
    %cst_8 = arith.constant dense<0.000000e+00> : vector<32x256xf32>
    %10 = tpu.matmul %8, %9, %cst_8 {dimension_numbers = #tpu.dot_dimension_numbers<[1], [0], [0], [1], [0, 0, 1, 1], [], []>} : vector<32x256xbf16>, vector<256x256xbf16>, vector<32x256xf32> -> vector<32x256xf32>
    %c0_9 = arith.constant 0 : index
    %c0_10 = arith.constant 0 : index
    %11 = vector.load %arg5[%c0_9, %c0_10] : memref<1x256xf32, #tpu.memory_space<vmem>>, vector<1x256xf32>
    %12 = vector.broadcast %11 : vector<1x256xf32> to vector<32x256xf32>
    %13 = arith.addf %10, %12 : vector<32x256xf32>
    %cst_11 = arith.constant 0.000000e+00 : f32
    %14 = vector.broadcast %cst_11 : f32 to vector<32x256xf32>
    %15 = arith.maximumf %13, %14 : vector<32x256xf32>
    %16 = arith.truncf %15 : vector<32x256xf32> to vector<32x256xbf16>
    %c0_12 = arith.constant 0 : index
    %c0_13 = arith.constant 0 : index
    %17 = vector.load %arg6[%c0_12, %c0_13] : memref<256x128xbf16, #tpu.memory_space<vmem>>, vector<256x128xbf16>
    %cst_14 = arith.constant dense<0.000000e+00> : vector<32x128xf32>
    %18 = tpu.matmul %16, %17, %cst_14 {dimension_numbers = #tpu.dot_dimension_numbers<[1], [0], [0], [1], [0, 0, 1, 1], [], []>} : vector<32x256xbf16>, vector<256x128xbf16>, vector<32x128xf32> -> vector<32x128xf32>
    %c0_15 = arith.constant 0 : index
    %c0_16 = arith.constant 0 : index
    %19 = vector.load %arg7[%c0_15, %c0_16] : memref<1x128xf32, #tpu.memory_space<vmem>>, vector<1x128xf32>
    %20 = vector.broadcast %19 : vector<1x128xf32> to vector<32x128xf32>
    %21 = arith.addf %18, %20 : vector<32x128xf32>
    %22 = arith.truncf %21 : vector<32x128xf32> to vector<32x128xbf16>
    %c0_17 = arith.constant 0 : index
    %c0_18 = arith.constant 0 : index
    %23 = vector.load %arg8[%c0_17, %c0_18] : memref<32x128xbf16, #tpu.memory_space<vmem>>, vector<32x128xbf16>
    tpu.vector_store %arg8[%c0_17, %c0_18], %22 {strides = array<i32>} : memref<32x128xbf16, #tpu.memory_space<vmem>>, vector<32x128xbf16>,
    return
  }
  func.func @transform_0(%arg0: i32) -> (i32, i32) {
    %c0_i32 = arith.constant 0 : i32
    %c0_i32_0 = arith.constant 0 : i32
    return %arg0, %c0_i32 : i32, i32
  }
  func.func @transform_1(%arg0: i32) -> (i32, i32) {
    %c0_i32 = arith.constant 0 : i32
    %c0_i32_0 = arith.constant 0 : i32
    %c0_i32_1 = arith.constant 0 : i32
    return %c0_i32, %c0_i32_0 : i32, i32
  }
  func.func @transform_2(%arg0: i32) -> (i32, i32) {
    %c0_i32 = arith.constant 0 : i32
    %c0_i32_0 = arith.constant 0 : i32
    %c0_i32_1 = arith.constant 0 : i32
    return %c0_i32, %c0_i32_0 : i32, i32
  }
  func.func @transform_3(%arg0: i32) -> (i32, i32) {
    %c0_i32 = arith.constant 0 : i32
    %c0_i32_0 = arith.constant 0 : i32
    %c0_i32_1 = arith.constant 0 : i32
    return %c0_i32, %c0_i32_0 : i32, i32
  }
  func.func @transform_4(%arg0: i32) -> (i32, i32) {
    %c0_i32 = arith.constant 0 : i32
    %c0_i32_0 = arith.constant 0 : i32
    %c0_i32_1 = arith.constant 0 : i32
    return %c0_i32, %c0_i32_0 : i32, i32
  }
  func.func @transform_5(%arg0: i32) -> (i32, i32) {
    %c0_i32 = arith.constant 0 : i32
    %c0_i32_0 = arith.constant 0 : i32
    %c0_i32_1 = arith.constant 0 : i32
    return %c0_i32, %c0_i32_0 : i32, i32
  }
  func.func @transform_6(%arg0: i32) -> (i32, i32) {
    %c0_i32 = arith.constant 0 : i32
    %c0_i32_0 = arith.constant 0 : i32
    %c0_i32_1 = arith.constant 0 : i32
    return %c0_i32, %c0_i32_0 : i32, i32
  }
  func.func @transform_7(%arg0: i32) -> (i32, i32) {
    %c0_i32 = arith.constant 0 : i32
    %c0_i32_0 = arith.constant 0 : i32
    return %arg0, %c0_i32 : i32, i32
  }
}

</mosaic_0001>

<llo_original>
// kernel: tpu_custom_call.1
$region0: #{tpu_custom_call.1}
  #allocation0 [shape = 'u32[]', space=smem, size = 0x4, offset = 0x4, fixed_abs, tag = 'smem constant byte address 0x4 - core index']
  #allocation1 [shape = 'u32[144,128]{1,0:T(1,128)}', space=vmem, size = 0x12000, scoped, tag = 'internal scratch']
  %s0 = inlined_call_operand.hbm [shape: bf16[64,256], index: 0, kind: input, shape index: {}]
  %s1 = inlined_call_operand.hbm [shape: bf16[256,256], index: 1, kind: input, shape index: {}]
  %s2 = inlined_call_operand.vmem [shape: f32[1,256], index: 2, kind: input, shape index: {}]
  %s3 = inlined_call_operand.hbm [shape: bf16[256,256], index: 3, kind: input, shape index: {}]
  %s4 = inlined_call_operand.vmem [shape: f32[1,256], index: 4, kind: input, shape index: {}]
  %s5 = inlined_call_operand.hbm [shape: bf16[256,128], index: 5, kind: input, shape index: {}]
  %s6 = inlined_call_operand.vmem [shape: f32[1,128], index: 6, kind: input, shape index: {}]
  %s7 = inlined_call_operand.hbm [shape: bf16[64,128], index: 7, kind: output, shape index: {}]
  %s8 = sld [smem:[#allocation0]]
  $region77: #{tpu_custom_call.1} parent=0
    _
  %s10 = ssub.s32 1, %s8
  %s11 = scalar_select 0, %s10, %s8
  $region1: #{tpu_custom_call.1} parent=0
    #allocation2 [shape = 'u8[32768]{0}', space=vmem, size = 0x8000, scoped, tag = 'input window, operand 0']
    #allocation3 [shape = 's32[2]{0}', space=sflag, size = 0x8, scoped, tag = 'scoped memory for tpu_custom_call.1']
    #allocation4 [shape = 's32[2]{0}', space=sflag, size = 0x8, scoped, tag = 'scoped memory for tpu_custom_call.1']
    #allocation5 [shape = 'u8[131072]{0}', space=vmem, size = 0x20000, scoped, tag = 'input window, operand 1, single buffered']
    #allocation6 [shape = 's32[1]{0}', space=sflag, size = 0x4, scoped, tag = 'scoped memory for tpu_custom_call.1']
    #allocation7 [shape = 'u8[131072]{0}', space=vmem, size = 0x20000, scoped, tag = 'input window, operand 3, single buffered']
    #allocation8 [shape = 'u8[65536]{0}', space=vmem, size = 0x10000, scoped, tag = 'input window, operand 5, single buffered']
    #allocation9 [shape = 's32[1]{0}', space=sflag, size = 0x4, scoped, tag = 'scoped memory for tpu_custom_call.1']
    #allocation10 [shape = 'u8[16384]{0}', space=vmem, size = 0x4000, scoped, tag = 'output window, operand 0']
    %12 = vsyncpa [#allocation3], 0
    %s13 = scalar_lea.sflag [#allocation3], 1
    %14 = vsyncpa %s13, 0
    %15 = vsyncpa [#allocation6], 0
    %16 = vsyncpa [#allocation9], 0
    %17 = vsyncpa [#allocation4], 0
    %s18 = scalar_lea.sflag [#allocation4], 1
    %19 = vsyncpa %s18, 0
    loop: start=0, step=1, limit=4
    $region2: #{tpu_custom_call.1} parent=1 // loop_pre_header
      _
    $region3: #{tpu_custom_call.1} parent=1 // loop_header
      %s21 = sphi 0, %s25
      %p22 = scmp.ge.s32.totalorder %s21, 4
      %s31 = sphi 0, %s33
      %s34 = sphi 0, %s31
      %s35 = sphi 0, %s34
      %s51 = sphi 0, %s35
      %s55 = sphi 0, %s55
      %s57 = sphi 0, %s55
      %s58 = sphi 0, %s57
      %s72 = sphi 0, %s58
      %s76 = sphi 0, %s76
      %s78 = sphi 0, %s76
      %s79 = sphi 0, %s78
      %s93 = sphi 0, %s79
      %s97 = sphi 0, %s97
      %s99 = sphi 0, %s97
      %s100 = sphi 0, %s99
      %s114 = sphi 0, %s100
      %s118 = sphi 0, %s118
      %s120 = sphi 0, %s118
      %s121 = sphi 0, %s120
      %s135 = sphi 0, %s121
      %s139 = sphi 0, %s139
      %s141 = sphi 0, %s139
      %s142 = sphi 0, %s141
      %s156 = sphi 0, %s142
      %s160 = sphi 0, %s160
      %s162 = sphi 0, %s160
      %s163 = sphi 0, %s162
      %s177 = sphi 0, %s163
      %s183 = sphi 0, %s185
      %s186 = sphi 0, %s183
      %s187 = sphi 0, %s186
      %s203 = sphi 0, %s187
    $region4: #{tpu_custom_call.1} parent=1 // loop_header_branch
      %24 = sbr.rel (%p22) target = $region8
    $region5: #{tpu_custom_call.1} parent=1 // loop_body
      %s26 = ssub.s32 %s21, 1
      %s27 = ssub.s32 %s21, 2
      %s28 = sadd.s32 %s21, 1
      %s29 = ssub.s32 %s21, %s28
      %p30 = scmp.eq.s32.totalorder %s29, 0
      %s32 = sadd.s32 %s31, 1
      %s33 = scalar_select %p30, %s31, %s32
      %p36 = pneg %p30
      %p37 = scmp.eq.s32.totalorder %s21, 1
      %p38 = por %p36, %p37
      %p39 = scmp.ne.s32.totalorder %s31, %s34
      %p40 = scmp.eq.s32.totalorder %s21, 0
      %p41 = por %p39, %p40
      %p42 = scmp.ne.s32.totalorder %s31, %s34
      %p43 = scmp.eq.s32.totalorder %s26, 1
      %p44 = por %p42, %p43
      %p45 = scmp.ne.s32.totalorder %s34, %s35
      %p46 = scmp.eq.s32.totalorder %s26, 0
      %p47 = por %p45, %p46
      %p48 = scmp.ne.s32.totalorder %s34, %s35
      %p49 = scmp.eq.s32.totalorder %s27, 1
      %p50 = por %p48, %p49
      %p52 = scmp.ne.s32.totalorder %s35, %s51
      %p53 = scmp.eq.s32.totalorder %s27, 0
      %p54 = por %p52, %p53
      %s56 = sadd.s32 %s55, 1
      %p59 = scmp.eq.s32.totalorder %s21, 1
      %p60 = scmp.ne.s32.totalorder %s55, %s57
      %p61 = scmp.eq.s32.totalorder %s21, 0
      %p62 = por %p60, %p61
      %p63 = scmp.ne.s32.totalorder %s55, %s57
      %p64 = scmp.eq.s32.totalorder %s26, 1
      %p65 = por %p63, %p64
      %p66 = scmp.ne.s32.totalorder %s57, %s58
      %p67 = scmp.eq.s32.totalorder %s26, 0
      %p68 = por %p66, %p67
      %p69 = scmp.ne.s32.totalorder %s57, %s58
      %p70 = scmp.eq.s32.totalorder %s27, 1
      %p71 = por %p69, %p70
      %p73 = scmp.ne.s32.totalorder %s58, %s72
      %p74 = scmp.eq.s32.totalorder %s27, 0
      %p75 = por %p73, %p74
      %s77 = sadd.s32 %s76, 1
      %p80 = scmp.eq.s32.totalorder %s21, 1
      %p81 = scmp.ne.s32.totalorder %s76, %s78
      %p82 = scmp.eq.s32.totalorder %s21, 0
      %p83 = por %p81, %p82
      %p84 = scmp.ne.s32.totalorder %s76, %s78
      %p85 = scmp.eq.s32.totalorder %s26, 1
      %p86 = por %p84, %p85
      %p87 = scmp.ne.s32.totalorder %s78, %s79
      %p88 = scmp.eq.s32.totalorder %s26, 0
      %p89 = por %p87, %p88
      %p90 = scmp.ne.s32.totalorder %s78, %s79
      %p91 = scmp.eq.s32.totalorder %s27, 1
      %p92 = por %p90, %p91
      %p94 = scmp.ne.s32.totalorder %s79, %s93
      %p95 = scmp.eq.s32.totalorder %s27, 0
      %p96 = por %p94, %p95
      %s98 = sadd.s32 %s97, 1
      %p101 = scmp.eq.s32.totalorder %s21, 1
      %p102 = scmp.ne.s32.totalorder %s97, %s99
      %p103 = scmp.eq.s32.totalorder %s21, 0
      %p104 = por %p102, %p103
      %p105 = scmp.ne.s32.totalorder %s97, %s99
      %p106 = scmp.eq.s32.totalorder %s26, 1
      %p107 = por %p105, %p106
      %p108 = scmp.ne.s32.totalorder %s99, %s100
      %p109 = scmp.eq.s32.totalorder %s26, 0
      %p110 = por %p108, %p109
      %p111 = scmp.ne.s32.totalorder %s99, %s100
      %p112 = scmp.eq.s32.totalorder %s27, 1
      %p113 = por %p111, %p112
      %p115 = scmp.ne.s32.totalorder %s100, %s114
      %p116 = scmp.eq.s32.totalorder %s27, 0
      %p117 = por %p115, %p116
      %s119 = sadd.s32 %s118, 1
      %p122 = scmp.eq.s32.totalorder %s21, 1
      %p123 = scmp.ne.s32.totalorder %s118, %s120
      %p124 = scmp.eq.s32.totalorder %s21, 0
      %p125 = por %p123, %p124
      %p126 = scmp.ne.s32.totalorder %s118, %s120
      %p127 = scmp.eq.s32.totalorder %s26, 1
      %p128 = por %p126, %p127
      %p129 = scmp.ne.s32.totalorder %s120, %s121
      %p130 = scmp.eq.s32.totalorder %s26, 0
      %p131 = por %p129, %p130
      %p132 = scmp.ne.s32.totalorder %s120, %s121
      %p133 = scmp.eq.s32.totalorder %s27, 1
      %p134 = por %p132, %p133
      %p136 = scmp.ne.s32.totalorder %s121, %s135
      %p137 = scmp.eq.s32.totalorder %s27, 0
      %p138 = por %p136, %p137
      %s140 = sadd.s32 %s139, 1
      %p143 = scmp.eq.s32.totalorder %s21, 1
      %p144 = scmp.ne.s32.totalorder %s139, %s141
      %p145 = scmp.eq.s32.totalorder %s21, 0
      %p146 = por %p144, %p145
      %p147 = scmp.ne.s32.totalorder %s139, %s141
      %p148 = scmp.eq.s32.totalorder %s26, 1
      %p149 = por %p147, %p148
      %p150 = scmp.ne.s32.totalorder %s141, %s142
      %p151 = scmp.eq.s32.totalorder %s26, 0
      %p152 = por %p150, %p151
      %p153 = scmp.ne.s32.totalorder %s141, %s142
      %p154 = scmp.eq.s32.totalorder %s27, 1
      %p155 = por %p153, %p154
      %p157 = scmp.ne.s32.totalorder %s142, %s156
      %p158 = scmp.eq.s32.totalorder %s27, 0
      %p159 = por %p157, %p158
      %s161 = sadd.s32 %s160, 1
      %p164 = scmp.eq.s32.totalorder %s21, 1
      %p165 = scmp.ne.s32.totalorder %s160, %s162
      %p166 = scmp.eq.s32.totalorder %s21, 0
      %p167 = por %p165, %p166
      %p168 = scmp.ne.s32.totalorder %s160, %s162
      %p169 = scmp.eq.s32.totalorder %s26, 1
      %p170 = por %p168, %p169
      %p171 = scmp.ne.s32.totalorder %s162, %s163
      %p172 = scmp.eq.s32.totalorder %s26, 0
      %p173 = por %p171, %p172
      %p174 = scmp.ne.s32.totalorder %s162, %s163
      %p175 = scmp.eq.s32.totalorder %s27, 1
      %p176 = por %p174, %p175
      %p178 = scmp.ne.s32.totalorder %s163, %s177
      %p179 = scmp.eq.s32.totalorder %s27, 0
      %p180 = por %p178, %p179
      %s181 = ssub.s32 %s21, %s28
      %p182 = scmp.eq.s32.totalorder %s181, 0
      %s184 = sadd.s32 %s183, 1
      %s185 = scalar_select %p182, %s183, %s184
      %p188 = pneg %p182
      %p189 = scmp.eq.s32.totalorder %s21, 1
      %p190 = por %p188, %p189
      %p191 = scmp.ne.s32.totalorder %s183, %s186
      %p192 = scmp.eq.s32.totalorder %s21, 0
      %p193 = por %p191, %p192
      %p194 = scmp.ne.s32.totalorder %s183, %s186
      %p195 = scmp.eq.s32.totalorder %s26, 1
      %p196 = por %p194, %p195
      %p197 = scmp.ne.s32.totalorder %s186, %s187
      %p198 = scmp.eq.s32.totalorder %s26, 0
      %p199 = por %p197, %p198
      %p200 = scmp.ne.s32.totalorder %s186, %s187
      %p201 = scmp.eq.s32.totalorder %s27, 1
      %p202 = por %p200, %p201
      %p204 = scmp.ne.s32.totalorder %s187, %s203
      %p205 = scmp.eq.s32.totalorder %s27, 0
      %p206 = por %p204, %p205
      %p207 = scmp.le.s32.totalorder 1, %s21
      %p208 = scmp.lt.s32.totalorder %s21, 3
      %p209 = pnand %p207, %p208
      %p210 = pneg %p209
      // Predicated region
      $region9: #{tpu_custom_call.1} parent=5 // pred_check
        _
      $region10: #{tpu_custom_call.1} parent=5 // pred_check_branch
        %212 = sbr.rel (%p209) target = $region12
      $region11: #{tpu_custom_call.1} parent=5 // pred_region
        %s213 = ssub.s32 %s21, 1
        // Predicated region
        $region13: #{tpu_custom_call.1} parent=11 // pred_check
          %p214 = pneg %p68
        $region14: #{tpu_custom_call.1} parent=11 // pred_check_branch
          %216 = sbr.rel (%p214) target = $region16
        $region15: #{tpu_custom_call.1} parent=11 // pred_region
          %s218 = ssub.s32 4096, 4096
          %219 = vsyncadd [#allocation6], %s218
          %s220 = sshll.u32 [#allocation5], 4
          %s221 = int_to_ptr.vmem [resolvable:$true] %s220
          %226 = dma.hbm_to_vmem [thread:$0]  %s1, 4096, %s221, [#allocation6], 128, 128, 8
        $region16: #{tpu_custom_call.1} parent=11 // pred_fallthru
          _
        // Predicated region
        $region17: #{tpu_custom_call.1} parent=11 // pred_check
          %p227 = pneg %p89
        $region18: #{tpu_custom_call.1} parent=11 // pred_check_branch
          %229 = sbr.rel (%p227) target = $region20
        $region19: #{tpu_custom_call.1} parent=11 // pred_region
          _
        $region20: #{tpu_custom_call.1} parent=11 // pred_fallthru
          _
        // Predicated region
        $region21: #{tpu_custom_call.1} parent=11 // pred_check
          %p230 = pneg %p110
        $region22: #{tpu_custom_call.1} parent=11 // pred_check_branch
          %232 = sbr.rel (%p230) target = $region24
        $region23: #{tpu_custom_call.1} parent=11 // pred_region
          %s234 = ssub.s32 4096, 4096
          %235 = vsyncadd [#allocation6], %s234
          %s236 = sshll.u32 [#allocation7], 4
          %s237 = int_to_ptr.vmem [resolvable:$true] %s236
          %242 = dma.hbm_to_vmem [thread:$0]  %s3, 4096, %s237, [#allocation6], 128, 128, 8
        $region24: #{tpu_custom_call.1} parent=11 // pred_fallthru
          _
        // Predicated region
        $region25: #{tpu_custom_call.1} parent=11 // pred_check
          %p243 = pneg %p131
        $region26: #{tpu_custom_call.1} parent=11 // pred_check_branch
          %245 = sbr.rel (%p243) target = $region28
        $region27: #{tpu_custom_call.1} parent=11 // pred_region
          _
        $region28: #{tpu_custom_call.1} parent=11 // pred_fallthru
          _
        // Predicated region
        $region29: #{tpu_custom_call.1} parent=11 // pred_check
          %p246 = pneg %p152
        $region30: #{tpu_custom_call.1} parent=11 // pred_check_branch
          %248 = sbr.rel (%p246) target = $region32
        $region31: #{tpu_custom_call.1} parent=11 // pred_region
          %s250 = ssub.s32 2048, 2048
          %251 = vsyncadd [#allocation9], %s250
          %s252 = sshll.u32 [#allocation8], 4
          %s253 = int_to_ptr.vmem [resolvable:$true] %s252
          %258 = dma.hbm_to_vmem [thread:$0]  %s5, 2048, %s253, [#allocation9], 64, 64, 4
        $region32: #{tpu_custom_call.1} parent=11 // pred_fallthru
          _
        // Predicated region
        $region33: #{tpu_custom_call.1} parent=11 // pred_check
          %p259 = pneg %p173
        $region34: #{tpu_custom_call.1} parent=11 // pred_check_branch
          %261 = sbr.rel (%p259) target = $region36
        $region35: #{tpu_custom_call.1} parent=11 // pred_region
          _
        $region36: #{tpu_custom_call.1} parent=11 // pred_fallthru
          _
      $region12: #{tpu_custom_call.1} parent=5 // pred_fallthru
        _
      %p262 = scmp.lt.s32.totalorder %s21, 2
      // Predicated region
      $region37: #{tpu_custom_call.1} parent=5 // pred_check
        %p263 = pneg %p262
      $region38: #{tpu_custom_call.1} parent=5 // pred_check_branch
        %265 = sbr.rel (%p263) target = $region40
      $region39: #{tpu_custom_call.1} parent=5 // pred_region
        // Predicated region
        $region41: #{tpu_custom_call.1} parent=39 // pred_check
          %p266 = pneg %p41
        $region42: #{tpu_custom_call.1} parent=39 // pred_check_branch
          %268 = sbr.rel (%p266) target = $region44
        $region43: #{tpu_custom_call.1} parent=39 // pred_region
          %s269 = sand.u32 %s31, 1
          %s270 = scalar_lea.sflag [#allocation3], %s269
          %s271 = sand.u32 %s31, 1
          %s272 = smul.addr %s271, 32
          %s273 = scalar_lea.vmem [#allocation2], %s272
          %s274 = smul.u32 4, %s21
          %s276 = ssub.s32 512, 512
          %277 = vsyncadd %s270, %s276
          %s278 = smul.addr %s274, 2
          %s279 = smul.addr %s278, 64
          %s280 = scalar_lea.hbm %s0, %s279
          %s281 = sshll.u32 %s273, 4
          %s282 = int_to_ptr.vmem [resolvable:$true] %s281
          %287 = dma.hbm_to_vmem [thread:$0]  %s280, 512, %s282, %s270, 128, 128, 8
        $region44: #{tpu_custom_call.1} parent=39 // pred_fallthru
          _
      $region40: #{tpu_custom_call.1} parent=5 // pred_fallthru
        _
      %p288 = scmp.le.s32.totalorder 1, %s21
      %p289 = scmp.lt.s32.totalorder %s21, 3
      %p290 = pnand %p288, %p289
      %p291 = pneg %p290
      // Predicated region
      $region45: #{tpu_custom_call.1} parent=5 // pred_check
        _
      $region46: #{tpu_custom_call.1} parent=5 // pred_check_branch
        %293 = sbr.rel (%p290) target = $region48
      $region47: #{tpu_custom_call.1} parent=5 // pred_region
        %s294 = ssub.s32 %s21, 1
        %s295 = sand.u32 %s34, 1
        %s296 = scalar_lea.sflag [#allocation3], %s295
        %s297 = sand.u32 %s34, 1
        %s298 = smul.addr %s297, 32
        %s299 = scalar_lea.vmem [#allocation2], %s298
        // Predicated region
        $region49: #{tpu_custom_call.1} parent=47 // pred_check
          %p300 = pneg %p47
        $region50: #{tpu_custom_call.1} parent=47 // pred_check_branch
          %302 = sbr.rel (%p300) target = $region52
        $region51: #{tpu_custom_call.1} parent=47 // pred_region
          %303 = dma.done %s296, 512
        $region52: #{tpu_custom_call.1} parent=47 // pred_fallthru
          _
        // Predicated region
        $region53: #{tpu_custom_call.1} parent=47 // pred_check
          %p304 = pneg %p68
        $region54: #{tpu_custom_call.1} parent=47 // pred_check_branch
          %306 = sbr.rel (%p304) target = $region56
        $region55: #{tpu_custom_call.1} parent=47 // pred_region
          %307 = dma.done [#allocation6], 4096
        $region56: #{tpu_custom_call.1} parent=47 // pred_fallthru
          _
        // Predicated region
        $region57: #{tpu_custom_call.1} parent=47 // pred_check
          %p308 = pneg %p110
        $region58: #{tpu_custom_call.1} parent=47 // pred_check_branch
          %310 = sbr.rel (%p308) target = $region60
        $region59: #{tpu_custom_call.1} parent=47 // pred_region
          %311 = dma.done [#allocation6], 4096
        $region60: #{tpu_custom_call.1} parent=47 // pred_fallthru
          _
        // Predicated region
        $region61: #{tpu_custom_call.1} parent=47 // pred_check
          %p312 = pneg %p152
        $region62: #{tpu_custom_call.1} parent=47 // pred_check_branch
          %314 = sbr.rel (%p312) target = $region64
        $region63: #{tpu_custom_call.1} parent=47 // pred_region
          %315 = dma.done [#allocation9], 2048
        $region64: #{tpu_custom_call.1} parent=47 // pred_fallthru
          _
        %s316 = sand.u32 %s34, 1
        %s317 = scalar_lea.sflag [#allocation3], %s316
        %s318 = sand.u32 %s34, 1
        %s319 = smul.addr %s318, 32
        %s320 = scalar_lea.vmem [#allocation2], %s319
        %p321 = pneg %p47
        %p322 = pneg %p44
        %p323 = pneg %p68
        %p324 = pneg %p65
        %p325 = pneg %p89
        %p326 = pneg %p86
        %p327 = pneg %p110
        %p328 = pneg %p107
        %p329 = pneg %p131
        %p330 = pneg %p128
        %p331 = pneg %p152
        %p332 = pneg %p149
        %p333 = pneg %p173
        %p334 = pneg %p170
        %p335 = pneg %p199
        %p336 = pneg %p196
        %s337 = sand.u32 %s186, 1
        %s338 = scalar_lea.sflag [#allocation4], %s337
        %s339 = sand.u32 %s186, 1
        %s340 = smul.addr %s339, 16
        %s341 = scalar_lea.vmem [#allocation10], %s340
        %s342 = smul.u32 4, %s26
        %s343 = smul.u32 4, %s26
        %v345 = vld [vmem:[%s299] sm:$0xff]
        %v346 = vld [vmem:[%s299 + $0x8] sm:$0xff]
        %v347 = vld [vmem:[%s299 + $0x10] sm:$0xff]
        %v348 = vld [vmem:[%s299 + $0x18] sm:$0xff]
        %v349 = vld [vmem:[#allocation5] sm:$0xff]
        %v350 = vld [vmem:[#allocation5 + $0x8] sm:$0xff]
        %v351 = vld [vmem:[#allocation5 + $0x10] sm:$0xff]
        %v352 = vld [vmem:[#allocation5 + $0x18] sm:$0xff]
        %v353 = vld [vmem:[#allocation5 + $0x20] sm:$0xff]
        %v354 = vld [vmem:[#allocation5 + $0x28] sm:$0xff]
        %v355 = vld [vmem:[#allocation5 + $0x30] sm:$0xff]
        %v356 = vld [vmem:[#allocation5 + $0x38] sm:$0xff]
        %v357 = vld [vmem:[#allocation5 + $0x40] sm:$0xff]
        %v358 = vld [vmem:[#allocation5 + $0x48] sm:$0xff]
        %v359 = vld [vmem:[#allocation5 + $0x50] sm:$0xff]
        %v360 = vld [vmem:[#allocation5 + $0x58] sm:$0xff]
        %v361 = vld [vmem:[#allocation5 + $0x60] sm:$0xff]
        %v362 = vld [vmem:[#allocation5 + $0x68] sm:$0xff]
        %v363 = vld [vmem:[#allocation5 + $0x70] sm:$0xff]
        %v364 = vld [vmem:[#allocation5 + $0x78] sm:$0xff]
        %v365 = vld [vmem:[#allocation5 + $0x80] sm:$0xff]
        %v366 = vld [vmem:[#allocation5 + $0x88] sm:$0xff]
        %v367 = vld [vmem:[#allocation5 + $0x90] sm:$0xff]
        %v368 = vld [vmem:[#allocation5 + $0x98] sm:$0xff]
        %v369 = vld [vmem:[#allocation5 + $0xa0] sm:$0xff]
        %v370 = vld [vmem:[#allocation5 + $0xa8] sm:$0xff]
        %v371 = vld [vmem:[#allocation5 + $0xb0] sm:$0xff]
        %v372 = vld [vmem:[#allocation5 + $0xb8] sm:$0xff]
        %v373 = vld [vmem:[#allocation5 + $0xc0] sm:$0xff]
        %v374 = vld [vmem:[#allocation5 + $0xc8] sm:$0xff]
        %v375 = vld [vmem:[#allocation5 + $0xd0] sm:$0xff]
        %v376 = vld [vmem:[#allocation5 + $0xd8] sm:$0xff]
        %v377 = vld [vmem:[#allocation5 + $0xe0] sm:$0xff]
        %v378 = vld [vmem:[#allocation5 + $0xe8] sm:$0xff]
        %v379 = vld [vmem:[#allocation5 + $0xf0] sm:$0xff]
        %v380 = vld [vmem:[#allocation5 + $0xf8] sm:$0xff]
        %v381 = vld [vmem:[%s2] sm:$0x3]
        %v383 = vlaneseq
        %v384 = vshrl.u32 %v383, 7
        %v385 = vsub.s32 0, %v384
        %v386 = vrot.slane %v381, %v385
        %v387 = vlaneseq
        %v388 = vshrl.u32 %v387, 7
        %v389 = vsub.s32 1, %v388
        %v390 = vrot.slane %v381, %v389
        %v397 = vunpack.c.l.b16 %v345
        %v398 = vunpack.c.h.b16 %v345
        %v399 = vunpack.c.l.b16 %v346
        %v400 = vunpack.c.h.b16 %v346
        %v401 = vunpack.c.l.b16 %v347
        %v402 = vunpack.c.h.b16 %v347
        %v403 = vunpack.c.l.b16 %v348
        %v404 = vunpack.c.h.b16 %v348
        %v405 = vpack.c.b16 %v399, %v397
        %v406 = vpack.c.b16 %v400, %v398
        %v407 = vpack.c.b16 %v403, %v401
        %v408 = vpack.c.b16 %v404, %v402
        %v445 = vunpack.c.l.b16 %v349
        %v446 = vunpack.c.h.b16 %v349
        %v447 = vunpack.c.l.b16 %v350
        %v448 = vunpack.c.h.b16 %v350
        %v449 = vunpack.c.l.b16 %v351
        %v450 = vunpack.c.h.b16 %v351
        %v451 = vunpack.c.l.b16 %v352
        %v452 = vunpack.c.h.b16 %v352
        %v453 = vunpack.c.l.b16 %v353
        %v454 = vunpack.c.h.b16 %v353
        %v455 = vunpack.c.l.b16 %v354
        %v456 = vunpack.c.h.b16 %v354
        %v457 = vunpack.c.l.b16 %v355
        %v458 = vunpack.c.h.b16 %v355
        %v459 = vunpack.c.l.b16 %v356
        %v460 = vunpack.c.h.b16 %v356
        %v461 = vunpack.c.l.b16 %v357
        %v462 = vunpack.c.h.b16 %v357
        %v463 = vunpack.c.l.b16 %v358
        %v464 = vunpack.c.h.b16 %v358
        %v465 = vunpack.c.l.b16 %v359
        %v466 = vunpack.c.h.b16 %v359
        %v467 = vunpack.c.l.b16 %v360
        %v468 = vunpack.c.h.b16 %v360
        %v469 = vunpack.c.l.b16 %v361
        %v470 = vunpack.c.h.b16 %v361
        %v471 = vunpack.c.l.b16 %v362
        %v472 = vunpack.c.h.b16 %v362
        %v473 = vunpack.c.l.b16 %v363
        %v474 = vunpack.c.h.b16 %v363
        %v475 = vunpack.c.l.b16 %v364
        %v476 = vunpack.c.h.b16 %v364
        %v477 = vunpack.c.l.b16 %v365
        %v478 = vunpack.c.h.b16 %v365
        %v479 = vunpack.c.l.b16 %v366
        %v480 = vunpack.c.h.b16 %v366
        %v481 = vunpack.c.l.b16 %v367
        %v482 = vunpack.c.h.b16 %v367
        %v483 = vunpack.c.l.b16 %v368
        %v484 = vunpack.c.h.b16 %v368
        %v485 = vunpack.c.l.b16 %v369
        %v486 = vunpack.c.h.b16 %v369
        %v487 = vunpack.c.l.b16 %v370
        %v488 = vunpack.c.h.b16 %v370
        %v489 = vunpack.c.l.b16 %v371
        %v490 = vunpack.c.h.b16 %v371
        %v491 = vunpack.c.l.b16 %v372
        %v492 = vunpack.c.h.b16 %v372
        %v493 = vunpack.c.l.b16 %v373
        %v494 = vunpack.c.h.b16 %v373
        %v495 = vunpack.c.l.b16 %v374
        %v496 = vunpack.c.h.b16 %v374
        %v497 = vunpack.c.l.b16 %v375
        %v498 = vunpack.c.h.b16 %v375
        %v499 = vunpack.c.l.b16 %v376
        %v500 = vunpack.c.h.b16 %v376
        %v501 = vunpack.c.l.b16 %v377
        %v502 = vunpack.c.h.b16 %v377
        %v503 = vunpack.c.l.b16 %v378
        %v504 = vunpack.c.h.b16 %v378
        %v505 = vunpack.c.l.b16 %v379
        %v506 = vunpack.c.h.b16 %v379
        %v507 = vunpack.c.l.b16 %v380
        %v508 = vunpack.c.h.b16 %v380
        %v509 = vpack.c.b16 %v447, %v445
        %v510 = vpack.c.b16 %v448, %v446
        %v511 = vpack.c.b16 %v451, %v449
        %v512 = vpack.c.b16 %v452, %v450
        %v513 = vpack.c.b16 %v455, %v453
        %v514 = vpack.c.b16 %v456, %v454
        %v515 = vpack.c.b16 %v459, %v457
        %v516 = vpack.c.b16 %v460, %v458
        %v517 = vpack.c.b16 %v463, %v461
        %v518 = vpack.c.b16 %v464, %v462
        %v519 = vpack.c.b16 %v467, %v465
        %v520 = vpack.c.b16 %v468, %v466
        %v521 = vpack.c.b16 %v471, %v469
        %v522 = vpack.c.b16 %v472, %v470
        %v523 = vpack.c.b16 %v475, %v473
        %v524 = vpack.c.b16 %v476, %v474
        %v525 = vpack.c.b16 %v479, %v477
        %v526 = vpack.c.b16 %v480, %v478
        %v527 = vpack.c.b16 %v483, %v481
        %v528 = vpack.c.b16 %v484, %v482
        %v529 = vpack.c.b16 %v487, %v485
        %v530 = vpack.c.b16 %v488, %v486
        %v531 = vpack.c.b16 %v491, %v489
        %v532 = vpack.c.b16 %v492, %v490
        %v533 = vpack.c.b16 %v495, %v493
        %v534 = vpack.c.b16 %v496, %v494
        %v535 = vpack.c.b16 %v499, %v497
        %v536 = vpack.c.b16 %v500, %v498
        %v537 = vpack.c.b16 %v503, %v501
        %v538 = vpack.c.b16 %v504, %v502
        %v539 = vpack.c.b16 %v507, %v505
        %v540 = vpack.c.b16 %v508, %v506
        %573 = vmatprep.subr.bf16.mxu0 %v510
        %574 = vmatpush1.bf16.msra.mxu0 %v509
        %575 = vmatprep.subr.bf16.mxu0 %v512
        %576 = vmatpush1.bf16.msra.mxu0 %v511
        %577 = vmatprep.subr.bf16.mxu0 %v514
        %578 = vmatpush1.bf16.msra.mxu0 %v513
        %579 = vmatprep.subr.bf16.mxu0 %v516
        %580 = vmatpush1.bf16.msra.mxu0 %v515
        %581 = vmatprep.subr.bf16.mxu0 %v518
        %582 = vmatpush1.bf16.msra.mxu0 %v517
        %583 = vmatprep.subr.bf16.mxu0 %v520
        %584 = vmatpush1.bf16.msra.mxu0 %v519
        %585 = vmatprep.subr.bf16.mxu0 %v522
        %586 = vmatpush1.bf16.msra.mxu0 %v521
        %587 = vmatprep.subr.bf16.mxu0 %v524
        %588 = vmatpush1.bf16.msra.mxu0 %v523
        %589 = vmatprep.subr.bf16.mxu0 %v526
        %590 = vmatpush1.bf16.msra.mxu0 %v525
        %591 = vmatprep.subr.bf16.mxu0 %v528
        %592 = vmatpush1.bf16.msra.mxu0 %v527
        %593 = vmatprep.subr.bf16.mxu0 %v530
        %594 = vmatpush1.bf16.msra.mxu0 %v529
        %595 = vmatprep.subr.bf16.mxu0 %v532
        %596 = vmatpush1.bf16.msra.mxu0 %v531
        %597 = vmatprep.subr.bf16.mxu0 %v534
        %598 = vmatpush1.bf16.msra.mxu0 %v533
        %599 = vmatprep.subr.bf16.mxu0 %v536
        %600 = vmatpush1.bf16.msra.mxu0 %v535
        %601 = vmatprep.subr.bf16.mxu0 %v538
        %602 = vmatpush1.bf16.msra.mxu0 %v537
        %603 = vmatprep.subr.bf16.mxu0 %v540
        %604 = vmatpush1.bf16.msra.mxu0 %v539
        %605 = vmatprep.mubr.bf16.mxu0 %v406
        %606 = vmatmul.mubr.bf16.gmra.mrb[0].mxu0 %v405
        %v607 = vpop.f32.mrb[0].mxu0
        %v608 = vadd.f32 %v386, %v607
        %v609 = vpop.f32.mrb[0].mxu0
        %v610 = vadd.f32 %v390, %v609
        %v611 = vpop.f32.mrb[0].mxu0
        %v612 = vadd.f32 %v386, %v611
        %v613 = vpop.f32.mrb[0].mxu0
        %v614 = vadd.f32 %v390, %v613
        %615 = vmatprep.mubr.bf16.mxu0 %v408
        %616 = vmatmul.mubr.bf16.gmra.mrb[0].mxu0 %v407
        %v617 = vpop.f32.mrb[0].mxu0
        %v618 = vadd.f32 %v386, %v617
        %v619 = vpop.f32.mrb[0].mxu0
        %v620 = vadd.f32 %v390, %v619
        %v621 = vpop.f32.mrb[0].mxu0
        %v622 = vadd.f32 %v386, %v621
        %v623 = vpop.f32.mrb[0].mxu0
        %v624 = vadd.f32 %v390, %v623
        %625 = vdwg.mxu0
        %v626 = vmax.f32 %v608, 0.0
        %v627 = vmax.f32 %v610, 0.0
        %v628 = vmax.f32 %v612, 0.0
        %v629 = vmax.f32 %v614, 0.0
        %v630 = vmax.f32 %v618, 0.0
        %v631 = vmax.f32 %v620, 0.0
        %v632 = vmax.f32 %v622, 0.0
        %v633 = vmax.f32 %v624, 0.0
        %v634 = vpack.c.bf16 %v628, %v626
        %v635 = vpack.c.bf16 %v629, %v627
        %v636 = vpack.c.bf16 %v632, %v630
        %v637 = vpack.c.bf16 %v633, %v631
        %v638 = vld [vmem:[#allocation7] sm:$0xff]
        %v639 = vld [vmem:[#allocation7 + $0x8] sm:$0xff]
        %v640 = vld [vmem:[#allocation7 + $0x10] sm:$0xff]
        %v641 = vld [vmem:[#allocation7 + $0x18] sm:$0xff]
        %v642 = vld [vmem:[#allocation7 + $0x20] sm:$0xff]
        %v643 = vld [vmem:[#allocation7 + $0x28] sm:$0xff]
        %v644 = vld [vmem:[#allocation7 + $0x30] sm:$0xff]
        %v645 = vld [vmem:[#allocation7 + $0x38] sm:$0xff]
        %v646 = vld [vmem:[#allocation7 + $0x40] sm:$0xff]
        %v647 = vld [vmem:[#allocation7 + $0x48] sm:$0xff]
        %v648 = vld [vmem:[#allocation7 + $0x50] sm:$0xff]
        %v649 = vld [vmem:[#allocation7 + $0x58] sm:$0xff]
        %v650 = vld [vmem:[#allocation7 + $0x60] sm:$0xff]
        %v651 = vld [vmem:[#allocation7 + $0x68] sm:$0xff]
        %v652 = vld [vmem:[#allocation7 + $0x70] sm:$0xff]
        %v653 = vld [vmem:[#allocation7 + $0x78] sm:$0xff]
        %v654 = vld [vmem:[#allocation7 + $0x80] sm:$0xff]
        %v655 = vld [vmem:[#allocation7 + $0x88] sm:$0xff]
        %v656 = vld [vmem:[#allocation7 + $0x90] sm:$0xff]
        %v657 = vld [vmem:[#allocation7 + $0x98] sm:$0xff]
        %v658 = vld [vmem:[#allocation7 + $0xa0] sm:$0xff]
        %v659 = vld [vmem:[#allocation7 + $0xa8] sm:$0xff]
        %v660 = vld [vmem:[#allocation7 + $0xb0] sm:$0xff]
        %v661 = vld [vmem:[#allocation7 + $0xb8] sm:$0xff]
        %v662 = vld [vmem:[#allocation7 + $0xc0] sm:$0xff]
        %v663 = vld [vmem:[#allocation7 + $0xc8] sm:$0xff]
        %v664 = vld [vmem:[#allocation7 + $0xd0] sm:$0xff]
        %v665 = vld [vmem:[#allocation7 + $0xd8] sm:$0xff]
        %v666 = vld [vmem:[#allocation7 + $0xe0] sm:$0xff]
        %v667 = vld [vmem:[#allocation7 + $0xe8] sm:$0xff]
        %v668 = vld [vmem:[#allocation7 + $0xf0] sm:$0xff]
        %v669 = vld [vmem:[#allocation7 + $0xf8] sm:$0xff]
        %v670 = vld [vmem:[%s4] sm:$0x3]
        %v672 = vlaneseq
        %v673 = vshrl.u32 %v672, 7
        %v674 = vsub.s32 0, %v673
        %v675 = vrot.slane %v670, %v674
        %v676 = vlaneseq
        %v677 = vshrl.u32 %v676, 7
        %v678 = vsub.s32 1, %v677
        %v679 = vrot.slane %v670, %v678
        %v714 = vunpack.c.l.b16 %v638
        %v715 = vunpack.c.h.b16 %v638
        %v716 = vunpack.c.l.b16 %v639
        %v717 = vunpack.c.h.b16 %v639
        %v718 = vunpack.c.l.b16 %v640
        %v719 = vunpack.c.h.b16 %v640
        %v720 = vunpack.c.l.b16 %v641
        %v721 = vunpack.c.h.b16 %v641
        %v722 = vunpack.c.l.b16 %v642
        %v723 = vunpack.c.h.b16 %v642
        %v724 = vunpack.c.l.b16 %v643
        %v725 = vunpack.c.h.b16 %v643
        %v726 = vunpack.c.l.b16 %v644
        %v727 = vunpack.c.h.b16 %v644
        %v728 = vunpack.c.l.b16 %v645
        %v729 = vunpack.c.h.b16 %v645
        %v730 = vunpack.c.l.b16 %v646
        %v731 = vunpack.c.h.b16 %v646
        %v732 = vunpack.c.l.b16 %v647
        %v733 = vunpack.c.h.b16 %v647
        %v734 = vunpack.c.l.b16 %v648
        %v735 = vunpack.c.h.b16 %v648
        %v736 = vunpack.c.l.b16 %v649
        %v737 = vunpack.c.h.b16 %v649
        %v738 = vunpack.c.l.b16 %v650
        %v739 = vunpack.c.h.b16 %v650
        %v740 = vunpack.c.l.b16 %v651
        %v741 = vunpack.c.h.b16 %v651
        %v742 = vunpack.c.l.b16 %v652
        %v743 = vunpack.c.h.b16 %v652
        %v744 = vunpack.c.l.b16 %v653
        %v745 = vunpack.c.h.b16 %v653
        %v746 = vunpack.c.l.b16 %v654
        %v747 = vunpack.c.h.b16 %v654
        %v748 = vunpack.c.l.b16 %v655
        %v749 = vunpack.c.h.b16 %v655
        %v750 = vunpack.c.l.b16 %v656
        %v751 = vunpack.c.h.b16 %v656
        %v752 = vunpack.c.l.b16 %v657
        %v753 = vunpack.c.h.b16 %v657
        %v754 = vunpack.c.l.b16 %v658
        %v755 = vunpack.c.h.b16 %v658
        %v756 = vunpack.c.l.b16 %v659
        %v757 = vunpack.c.h.b16 %v659
        %v758 = vunpack.c.l.b16 %v660
        %v759 = vunpack.c.h.b16 %v660
        %v760 = vunpack.c.l.b16 %v661
        %v761 = vunpack.c.h.b16 %v661
        %v762 = vunpack.c.l.b16 %v662
        %v763 = vunpack.c.h.b16 %v662
        %v764 = vunpack.c.l.b16 %v663
        %v765 = vunpack.c.h.b16 %v663
        %v766 = vunpack.c.l.b16 %v664
        %v767 = vunpack.c.h.b16 %v664
        %v768 = vunpack.c.l.b16 %v665
        %v769 = vunpack.c.h.b16 %v665
        %v770 = vunpack.c.l.b16 %v666
        %v771 = vunpack.c.h.b16 %v666
        %v772 = vunpack.c.l.b16 %v667
        %v773 = vunpack.c.h.b16 %v667
        %v774 = vunpack.c.l.b16 %v668
        %v775 = vunpack.c.h.b16 %v668
        %v776 = vunpack.c.l.b16 %v669
        %v777 = vunpack.c.h.b16 %v669
        %v778 = vpack.c.b16 %v716, %v714
        %v779 = vpack.c.b16 %v717, %v715
        %v780 = vpack.c.b16 %v720, %v718
        %v781 = vpack.c.b16 %v721, %v719
        %v782 = vpack.c.b16 %v724, %v722
        %v783 = vpack.c.b16 %v725, %v723
        %v784 = vpack.c.b16 %v728, %v726
        %v785 = vpack.c.b16 %v729, %v727
        %v786 = vpack.c.b16 %v732, %v730
        %v787 = vpack.c.b16 %v733, %v731
        %v788 = vpack.c.b16 %v736, %v734
        %v789 = vpack.c.b16 %v737, %v735
        %v790 = vpack.c.b16 %v740, %v738
        %v791 = vpack.c.b16 %v741, %v739
        %v792 = vpack.c.b16 %v744, %v742
        %v793 = vpack.c.b16 %v745, %v743
        %v794 = vpack.c.b16 %v748, %v746
        %v795 = vpack.c.b16 %v749, %v747
        %v796 = vpack.c.b16 %v752, %v750
        %v797 = vpack.c.b16 %v753, %v751
        %v798 = vpack.c.b16 %v756, %v754
        %v799 = vpack.c.b16 %v757, %v755
        %v800 = vpack.c.b16 %v760, %v758
        %v801 = vpack.c.b16 %v761, %v759
        %v802 = vpack.c.b16 %v764, %v762
        %v803 = vpack.c.b16 %v765, %v763
        %v804 = vpack.c.b16 %v768, %v766
        %v805 = vpack.c.b16 %v769, %v767
        %v806 = vpack.c.b16 %v772, %v770
        %v807 = vpack.c.b16 %v773, %v771
        %v808 = vpack.c.b16 %v776, %v774
        %v809 = vpack.c.b16 %v777, %v775
        %842 = vmatprep.subr.bf16.mxu0 %v779
        %843 = vmatpush1.bf16.msra.mxu0 %v778
        %844 = vmatprep.subr.bf16.mxu0 %v781
        %845 = vmatpush1.bf16.msra.mxu0 %v780
        %846 = vmatprep.subr.bf16.mxu0 %v783
        %847 = vmatpush1.bf16.msra.mxu0 %v782
        %848 = vmatprep.subr.bf16.mxu0 %v785
        %849 = vmatpush1.bf16.msra.mxu0 %v784
        %850 = vmatprep.subr.bf16.mxu0 %v787
        %851 = vmatpush1.bf16.msra.mxu0 %v786
        %852 = vmatprep.subr.bf16.mxu0 %v789
        %853 = vmatpush1.bf16.msra.mxu0 %v788
        %854 = vmatprep.subr.bf16.mxu0 %v791
        %855 = vmatpush1.bf16.msra.mxu0 %v790
        %856 = vmatprep.subr.bf16.mxu0 %v793
        %857 = vmatpush1.bf16.msra.mxu0 %v792
        %858 = vmatprep.subr.bf16.mxu0 %v795
        %859 = vmatpush1.bf16.msra.mxu0 %v794
        %860 = vmatprep.subr.bf16.mxu0 %v797
        %861 = vmatpush1.bf16.msra.mxu0 %v796
        %862 = vmatprep.subr.bf16.mxu0 %v799
        %863 = vmatpush1.bf16.msra.mxu0 %v798
        %864 = vmatprep.subr.bf16.mxu0 %v801
        %865 = vmatpush1.bf16.msra.mxu0 %v800
        %866 = vmatprep.subr.bf16.mxu0 %v803
        %867 = vmatpush1.bf16.msra.mxu0 %v802
        %868 = vmatprep.subr.bf16.mxu0 %v805
        %869 = vmatpush1.bf16.msra.mxu0 %v804
        %870 = vmatprep.subr.bf16.mxu0 %v807
        %871 = vmatpush1.bf16.msra.mxu0 %v806
        %872 = vmatprep.subr.bf16.mxu0 %v809
        %873 = vmatpush1.bf16.msra.mxu0 %v808
        %874 = vmatprep.mubr.bf16.mxu0 %v635
        %875 = vmatmul.mubr.bf16.gmra.mrb[0].mxu0 %v634
        %v876 = vpop.f32.mrb[0].mxu0
        %v877 = vadd.f32 %v675, %v876
        %v878 = vpop.f32.mrb[0].mxu0
        %v879 = vadd.f32 %v679, %v878
        %v880 = vpop.f32.mrb[0].mxu0
        %v881 = vadd.f32 %v675, %v880
        %v882 = vpop.f32.mrb[0].mxu0
        %v883 = vadd.f32 %v679, %v882
        %884 = vmatprep.mubr.bf16.mxu0 %v637
        %885 = vmatmul.mubr.bf16.gmra.mrb[0].mxu0 %v636
        %v886 = vpop.f32.mrb[0].mxu0
        %v887 = vadd.f32 %v675, %v886
        %v888 = vpop.f32.mrb[0].mxu0
        %v889 = vadd.f32 %v679, %v888
        %v890 = vpop.f32.mrb[0].mxu0
        %v891 = vadd.f32 %v675, %v890
        %v892 = vpop.f32.mrb[0].mxu0
        %v893 = vadd.f32 %v679, %v892
        %894 = vdwg.mxu0
        %v895 = vmax.f32 %v877, 0.0
        %v896 = vmax.f32 %v879, 0.0
        %v897 = vmax.f32 %v881, 0.0
        %v898 = vmax.f32 %v883, 0.0
        %v899 = vmax.f32 %v887, 0.0
        %v900 = vmax.f32 %v889, 0.0
        %v901 = vmax.f32 %v891, 0.0
        %v902 = vmax.f32 %v893, 0.0
        %v903 = vpack.c.bf16 %v897, %v895
        %v904 = vpack.c.bf16 %v898, %v896
        %v905 = vpack.c.bf16 %v901, %v899
        %v906 = vpack.c.bf16 %v902, %v900
        %v907 = vld [vmem:[#allocation8] sm:$0xf]
        %v908 = vld [vmem:[#allocation8 + $0x4] sm:$0xf]
        %v909 = vld [vmem:[#allocation8 + $0x8] sm:$0xf]
        %v910 = vld [vmem:[#allocation8 + $0xc] sm:$0xf]
        %v911 = vld [vmem:[#allocation8 + $0x10] sm:$0xf]
        %v912 = vld [vmem:[#allocation8 + $0x14] sm:$0xf]
        %v913 = vld [vmem:[#allocation8 + $0x18] sm:$0xf]
        %v914 = vld [vmem:[#allocation8 + $0x1c] sm:$0xf]
        %v915 = vld [vmem:[#allocation8 + $0x20] sm:$0xf]
        %v916 = vld [vmem:[#allocation8 + $0x24] sm:$0xf]
        %v917 = vld [vmem:[#allocation8 + $0x28] sm:$0xf]
        %v918 = vld [vmem:[#allocation8 + $0x2c] sm:$0xf]
        %v919 = vld [vmem:[#allocation8 + $0x30] sm:$0xf]
        %v920 = vld [vmem:[#allocation8 + $0x34] sm:$0xf]
        %v921 = vld [vmem:[#allocation8 + $0x38] sm:$0xf]
        %v922 = vld [vmem:[#allocation8 + $0x3c] sm:$0xf]
        %v923 = vld [vmem:[#allocation8 + $0x40] sm:$0xf]
        %v924 = vld [vmem:[#allocation8 + $0x44] sm:$0xf]
        %v925 = vld [vmem:[#allocation8 + $0x48] sm:$0xf]
        %v926 = vld [vmem:[#allocation8 + $0x4c] sm:$0xf]
        %v927 = vld [vmem:[#allocation8 + $0x50] sm:$0xf]
        %v928 = vld [vmem:[#allocation8 + $0x54] sm:$0xf]
        %v929 = vld [vmem:[#allocation8 + $0x58] sm:$0xf]
        %v930 = vld [vmem:[#allocation8 + $0x5c] sm:$0xf]
        %v931 = vld [vmem:[#allocation8 + $0x60] sm:$0xf]
        %v932 = vld [vmem:[#allocation8 + $0x64] sm:$0xf]
        %v933 = vld [vmem:[#allocation8 + $0x68] sm:$0xf]
        %v934 = vld [vmem:[#allocation8 + $0x6c] sm:$0xf]
        %v935 = vld [vmem:[#allocation8 + $0x70] sm:$0xf]
        %v936 = vld [vmem:[#allocation8 + $0x74] sm:$0xf]
        %v937 = vld [vmem:[#allocation8 + $0x78] sm:$0xf]
        %v938 = vld [vmem:[#allocation8 + $0x7c] sm:$0xf]
        %v939 = vld [vmem:[%s6] sm:$0x1]
        %v941 = vlaneseq
        %v942 = vshrl.u32 %v941, 7
        %v943 = vsub.s32 0, %v942
        %v944 = vrot.slane %v939, %v943
        %v978 = vunpack.c.l.b16 %v907
        %v979 = vunpack.c.l.b16 %v908
        %v980 = vunpack.c.l.b16 %v909
        %v981 = vunpack.c.l.b16 %v910
        %v982 = vunpack.c.l.b16 %v911
        %v983 = vunpack.c.l.b16 %v912
        %v984 = vunpack.c.l.b16 %v913
        %v985 = vunpack.c.l.b16 %v914
        %v986 = vunpack.c.l.b16 %v915
        %v987 = vunpack.c.l.b16 %v916
        %v988 = vunpack.c.l.b16 %v917
        %v989 = vunpack.c.l.b16 %v918
        %v990 = vunpack.c.l.b16 %v919
        %v991 = vunpack.c.l.b16 %v920
        %v992 = vunpack.c.l.b16 %v921
        %v993 = vunpack.c.l.b16 %v922
        %v994 = vunpack.c.l.b16 %v923
        %v995 = vunpack.c.l.b16 %v924
        %v996 = vunpack.c.l.b16 %v925
        %v997 = vunpack.c.l.b16 %v926
        %v998 = vunpack.c.l.b16 %v927
        %v999 = vunpack.c.l.b16 %v928
        %v1000 = vunpack.c.l.b16 %v929
        %v1001 = vunpack.c.l.b16 %v930
        %v1002 = vunpack.c.l.b16 %v931
        %v1003 = vunpack.c.l.b16 %v932
        %v1004 = vunpack.c.l.b16 %v933
        %v1005 = vunpack.c.l.b16 %v934
        %v1006 = vunpack.c.l.b16 %v935
        %v1007 = vunpack.c.l.b16 %v936
        %v1008 = vunpack.c.l.b16 %v937
        %v1009 = vunpack.c.l.b16 %v938
        %v1010 = vpack.c.b16 %v979, %v978
        %v1011 = vpack.c.b16 %v981, %v980
        %v1012 = vpack.c.b16 %v983, %v982
        %v1013 = vpack.c.b16 %v985, %v984
        %v1014 = vpack.c.b16 %v987, %v986
        %v1015 = vpack.c.b16 %v989, %v988
        %v1016 = vpack.c.b16 %v991, %v990
        %v1017 = vpack.c.b16 %v993, %v992
        %v1018 = vpack.c.b16 %v995, %v994
        %v1019 = vpack.c.b16 %v997, %v996
        %v1020 = vpack.c.b16 %v999, %v998
        %v1021 = vpack.c.b16 %v1001, %v1000
        %v1022 = vpack.c.b16 %v1003, %v1002
        %v1023 = vpack.c.b16 %v1005, %v1004
        %v1024 = vpack.c.b16 %v1007, %v1006
        %v1025 = vpack.c.b16 %v1009, %v1008
        %1042 = vmatprep.subr.bf16.mxu0 0
        %1043 = vmatpush1.bf16.msra.mxu0 %v1010
        %1044 = vmatprep.subr.bf16.mxu0 0
        %1045 = vmatpush1.bf16.msra.mxu0 %v1011
        %1046 = vmatprep.subr.bf16.mxu0 0
        %1047 = vmatpush1.bf16.msra.mxu0 %v1012
        %1048 = vmatprep.subr.bf16.mxu0 0
        %1049 = vmatpush1.bf16.msra.mxu0 %v1013
        %1050 = vmatprep.subr.bf16.mxu0 0
        %1051 = vmatpush1.bf16.msra.mxu0 %v1014
        %1052 = vmatprep.subr.bf16.mxu0 0
        %1053 = vmatpush1.bf16.msra.mxu0 %v1015
        %1054 = vmatprep.subr.bf16.mxu0 0
        %1055 = vmatpush1.bf16.msra.mxu0 %v1016
        %1056 = vmatprep.subr.bf16.mxu0 0
        %1057 = vmatpush1.bf16.msra.mxu0 %v1017
        %1058 = vmatprep.subr.bf16.mxu0 0
        %1059 = vmatpush1.bf16.msra.mxu0 %v1018
        %1060 = vmatprep.subr.bf16.mxu0 0
        %1061 = vmatpush1.bf16.msra.mxu0 %v1019
        %1062 = vmatprep.subr.bf16.mxu0 0
        %1063 = vmatpush1.bf16.msra.mxu0 %v1020
        %1064 = vmatprep.subr.bf16.mxu0 0
        %1065 = vmatpush1.bf16.msra.mxu0 %v1021
        %1066 = vmatprep.subr.bf16.mxu0 0
        %1067 = vmatpush1.bf16.msra.mxu0 %v1022
        %1068 = vmatprep.subr.bf16.mxu0 0
        %1069 = vmatpush1.bf16.msra.mxu0 %v1023
        %1070 = vmatprep.subr.bf16.mxu0 0
        %1071 = vmatpush1.bf16.msra.mxu0 %v1024
        %1072 = vmatprep.subr.bf16.mxu0 0
        %1073 = vmatpush1.bf16.msra.mxu0 %v1025
        %1074 = vmatprep.mubr.bf16.mxu0 %v904
        %1075 = vmatmul.mubr.bf16.gmra.mrb[0].mxu0 %v903
        %v1076 = vpop.f32.mrb[0].mxu0
        %v1077 = vadd.f32 %v944, %v1076
        %v1078 = vpop.f32.mrb[0].mxu0
        %v1079 = vpop.f32.mrb[0].mxu0
        %v1080 = vadd.f32 %v944, %v1079
        %v1081 = vpop.f32.mrb[0].mxu0
        %1082 = vmatprep.mubr.bf16.mxu0 %v906
        %1083 = vmatmul.mubr.bf16.gmra.mrb[0].mxu0 %v905
        %v1084 = vpop.f32.mrb[0].mxu0
        %v1085 = vadd.f32 %v944, %v1084
        %v1086 = vpop.f32.mrb[0].mxu0
        %v1087 = vpop.f32.mrb[0].mxu0
        %v1088 = vadd.f32 %v944, %v1087
        %v1089 = vpop.f32.mrb[0].mxu0
        %1090 = vdwg.mxu0
        %v1091 = vpack.c.bf16 %v1080, %v1077
        %v1092 = vpack.c.bf16 %v1088, %v1085
        %v1095 = vunpack.c.l.b16 %v1091
        %v1096 = vunpack.c.h.b16 %v1091
        %v1097 = vunpack.c.l.b16 %v1092
        %v1098 = vunpack.c.h.b16 %v1092
        %v1099 = vpack.c.b16 %v1095, %v1095
        %v1100 = vpack.c.b16 %v1096, %v1096
        %v1101 = vpack.c.b16 %v1097, %v1097
        %v1102 = vpack.c.b16 %v1098, %v1098
        %1107 = vst [vmem:[%s341] sm:$0xf] %v1099
        %1108 = vst [vmem:[%s341 + $0x4] sm:$0xf] %v1100
        %1109 = vst [vmem:[%s341 + $0x8] sm:$0xf] %v1101
        %1110 = vst [vmem:[%s341 + $0xc] sm:$0xf] %v1102
        %s1111 = sand.u32 %s186, 1
        %s1112 = scalar_lea.sflag [#allocation4], %s1111
        %s1113 = sand.u32 %s186, 1
        %s1114 = smul.addr %s1113, 16
        %s1115 = scalar_lea.vmem [#allocation10], %s1114
        // Predicated region
        $region65: #{tpu_custom_call.1} parent=47 // pred_check
          %p1116 = pneg %p196
        $region66: #{tpu_custom_call.1} parent=47 // pred_check_branch
          %1118 = sbr.rel (%p1116) target = $region68
        $region67: #{tpu_custom_call.1} parent=47 // pred_region
          %s1119 = smul.u32 4, %s26
          %s1121 = ssub.s32 256, 256
          %1122 = vsyncadd %s1112, %s1121
          %s1123 = smul.addr %s1119, 64
          %s1124 = scalar_lea.hbm %s7, %s1123
          %s1125 = sshll.u32 %s1115, 4
          %s1126 = int_to_ptr.vmem [resolvable:$true] %s1125
          %1131 = dma.vmem_to_hbm [thread:$0]  %s1126, 256, %s1124, %s1112, 64, 64, 4
        $region68: #{tpu_custom_call.1} parent=47 // pred_fallthru
          _
      $region48: #{tpu_custom_call.1} parent=5 // pred_fallthru
        _
      %p1132 = scmp.le.s32.totalorder 2, %s21
      // Predicated region
      $region69: #{tpu_custom_call.1} parent=5 // pred_check
        %p1133 = pneg %p1132
      $region70: #{tpu_custom_call.1} parent=5 // pred_check_branch
        %1135 = sbr.rel (%p1133) target = $region72
      $region71: #{tpu_custom_call.1} parent=5 // pred_region
        %s1136 = ssub.s32 %s21, 2
        // Predicated region
        $region73: #{tpu_custom_call.1} parent=71 // pred_check
          %p1137 = pneg %p202
        $region74: #{tpu_custom_call.1} parent=71 // pred_check_branch
          %1139 = sbr.rel (%p1137) target = $region76
        $region75: #{tpu_custom_call.1} parent=71 // pred_region
          %s1140 = sand.u32 %s187, 1
          %s1141 = scalar_lea.sflag [#allocation4], %s1140
          %s1142 = sand.u32 %s187, 1
          %s1143 = smul.addr %s1142, 16
          %s1144 = scalar_lea.vmem [#allocation10], %s1143
          %1145 = dma.done %s1141, 256
        $region76: #{tpu_custom_call.1} parent=71 // pred_fallthru
          _
      $region72: #{tpu_custom_call.1} parent=5 // pred_fallthru
        _
    $region6: #{tpu_custom_call.1} parent=1 // loop_footer
      %s25 = sadd.s32 1, %s21
    $region7: #{tpu_custom_call.1} parent=1 // loop_footer_branch
      %20 = sbr.rel target = $region3
    $region8: #{tpu_custom_call.1} parent=1 // loop_exit
      _
    %1146 = vsyncpa [#allocation3], 1
    %s1147 = scalar_lea.sflag [#allocation3], 1
    %1148 = vsyncpa %s1147, 1
    %1149 = vsyncpa [#allocation6], 1
    %1150 = vsyncpa [#allocation9], 1
    %1151 = vsyncpa [#allocation4], 1
    %s1152 = scalar_lea.sflag [#allocation4], 1
    %1153 = vsyncpa %s1152, 1

</llo_original>
